<compile_context>
chip_gen: v5e
topology: v5e:2x2
jax: 0.10.0
libtpu: 0.0.40
codegen_flags: <defaults>
</compile_context>

<pallas_src>
import jax
import jax.numpy as jnp
from jax.experimental import pallas as pl
from jax.experimental.pallas import tpu as pltpu


def _round_up(x: int, m: int) -> int:
    return (x + m - 1) // m * m


def _pick_tile(padded_dim: int, granule: int, max_tile: int) -> int:
    """Largest multiple of `granule` <= max_tile that exactly divides padded_dim."""
    best = granule
    t = granule
    limit = min(max_tile, padded_dim)
    while t <= limit:
        if padded_dim % t == 0:
            best = t
        t += granule
    return best


# ---------------------------------------------------------------------------
# Kernels
# ---------------------------------------------------------------------------

def _linear_kernel_single_k(x_ref, w_ref, b_ref, o_ref):
    # Whole K fits one tile: no accumulator, no phase gating.
    acc = jnp.dot(x_ref[...], w_ref[...], preferred_element_type=jnp.float32)
    o_ref[...] = (acc + b_ref[...]).astype(o_ref.dtype)


def _linear_kernel_multi_k_f32out(x_ref, w_ref, b_ref, o_ref):
    # f32 output: accumulate directly into the resident output block (no scratch).
    k = pl.program_id(2)

    @pl.when(k == 0)
    def _():
        o_ref[...] = jnp.zeros_like(o_ref)

    o_ref[...] += jnp.dot(x_ref[...], w_ref[...], preferred_element_type=jnp.float32)

    @pl.when(k == pl.num_programs(2) - 1)
    def _():
        o_ref[...] += b_ref[...]


def _linear_kernel_multi_k_scratch(x_ref, w_ref, b_ref, o_ref, acc_ref):
    # Non-f32 output: f32 VMEM accumulator, bias added once in the finalize step.
    k = pl.program_id(2)

    @pl.when(k == 0)
    def _():
        acc_ref[...] = jnp.zeros_like(acc_ref)

    acc_ref[...] += jnp.dot(x_ref[...], w_ref[...], preferred_element_type=jnp.float32)

    @pl.when(k == pl.num_programs(2) - 1)
    def _():
        o_ref[...] = (acc_ref[...] + b_ref[...]).astype(o_ref.dtype)


# ---------------------------------------------------------------------------
# Setup-time parameter preparation (run ONCE, not per forward call)
# ---------------------------------------------------------------------------

def prepare_classifier_params(weight, bias, *, compute_dtype=None):
    """Transpose + pad (+ optionally cast) nn.Linear params once at setup.

    weight: [n_classes, in_size]  (PyTorch nn.Linear layout)
    bias:   [n_classes]
    Returns a dict with w_t [k_pad, n_pad] (128-aligned), b [1, n_pad] (f32),
    and the logical sizes.
    """
    n_classes, in_size = weight.shape
    k_pad = _round_up(in_size, 128)
    n_pad = _round_up(n_classes, 128)
    w_t = jnp.pad(jnp.asarray(weight).T,
                  ((0, k_pad - in_size), (0, n_pad - n_classes)))
    if compute_dtype is not None:
        w_t = w_t.astype(compute_dtype)
    b_p = jnp.pad(jnp.asarray(bias).astype(jnp.float32),
                  (0, n_pad - n_classes)).reshape(1, n_pad)
    return dict(w_t=w_t, b=b_p, n_classes=n_classes, in_size=in_size)


# ---------------------------------------------------------------------------
# Forward
# ---------------------------------------------------------------------------

def classifier_forward(x, w_t, b, *, n_classes=None,
                       tm: int = 1024, tn: int = 512, tk: int = 1024,
                       compute_dtype=None, allow_small_fallback: bool = True):
    """y = x @ w_t + b.

    x:   [B, in_size]
    w_t: [K, N]  transposed weight; may be pre-padded by prepare_classifier_params.
    b:   [N] or [1, N] bias (may be pre-padded, f32 preferred).
    n_classes: logical class count (defaults to w_t.shape[1]).
    """
    B, k_x = x.shape
    k_w, n_w = w_t.shape
    assert k_x <= k_w, "x feature dim exceeds weight K dim"
    n_out = n_w if n_classes is None else n_classes

    out_dtype = x.dtype
    b2 = jnp.asarray(b).reshape(1, -1).astype(jnp.float32)
    assert b2.shape[1] >= n_out

    m_al = _round_up(B, 8)
    k_al = _round_up(k_w, 128)
    n_al = _round_up(n_w, 128)

    # Small-shape fast path: the grid machinery costs more than the matmul.
    if allow_small_fallback and m_al * k_al * n_al <= 8 * 128 * 128:
        y = jnp.dot(x, w_t[:k_x, :n_out], preferred_element_type=jnp.float32)
        return (y + b2[0, :n_out]).astype(out_dtype)

    # Tile selection: exact divisors of the aligned dims (no extra padding),
    # full-M tiling when the batch fits so W is streamed from HBM once.
    tm = _pick_tile(m_al, 8, tm)
    tk = _pick_tile(k_al, 128, tk)
    tn = _pick_tile(n_al, 128, tn)

    # v7x has 2 TensorCores: if the whole batch is a single M tile, split N into
    # >=2 parallel blocks so both cores get work (harmless on v5e/v6e).
    if m_al // tm == 1 and n_al // tn == 1 and n_al >= 256:
        half = n_al // 2
        tn = half if half % 128 == 0 else 128

    nm, nn, nk = m_al // tm, n_al // tn, k_al // tk

    # Activations: pad (cheap, only [B, K]) and optionally cast.
    x_p = x
    if x_p.shape != (m_al, k_al):
        x_p = jnp.pad(x_p, ((0, m_al - B), (0, k_al - k_x)))
    if compute_dtype is not None and x_p.dtype != compute_dtype:
        x_p = x_p.astype(compute_dtype)

    # Weights / bias: no-ops when pre-padded via prepare_classifier_params.
    w_p = w_t
    if w_p.shape != (k_al, n_al):
        w_p = jnp.pad(w_p, ((0, k_al - k_w), (0, n_al - n_w)))
    if compute_dtype is not None and w_p.dtype != compute_dtype:
        w_p = w_p.astype(compute_dtype)
    b_p = b2
    if b_p.shape != (1, n_al):
        b_p = jnp.pad(b_p, ((0, 0), (0, n_al - b_p.shape[1])))

    x_item = jnp.dtype(x_p.dtype).itemsize
    w_item = jnp.dtype(w_p.dtype).itemsize
    o_item = jnp.dtype(out_dtype).itemsize

    flops = 2 * m_al * n_al * k_al
    bytes_accessed = (m_al * k_al * x_item          # activations read once
                      + nm * k_al * n_al * w_item   # weight re-read per M block
                      + n_al * 4                    # bias
                      + m_al * n_al * o_item)       # output write

    use_scratch = (nk > 1) and (out_dtype != jnp.float32)
    vmem_need = 2 * (tm * tk * x_item + tk * tn * w_item + tm * tn * o_item + tn * 4)
    if use_scratch:
        vmem_need += tm * tn * 4
    # Explicit budget: generous, but safely under v7x's 64 MiB physical VMEM.
    vmem_limit = int(min(max(2 * vmem_need, 32 << 20), 56 << 20))

    if nk == 1:
        grid = (nm, nn)
        in_specs = [
            pl.BlockSpec((tm, tk), lambda i, j: (i, 0)),   # activations
            pl.BlockSpec((tk, tn), lambda i, j: (0, j)),   # weights
            pl.BlockSpec((1, tn), lambda i, j: (0, j)),    # bias
        ]
        out_spec = pl.BlockSpec((tm, tn), lambda i, j: (i, j))
        kernel = _linear_kernel_single_k
        scratch = []
        semantics = ("parallel", "parallel")
    else:
        grid = (nm, nn, nk)
        in_specs = [
            pl.BlockSpec((tm, tk), lambda i, j, k: (i, k)),   # activations
            pl.BlockSpec((tk, tn), lambda i, j, k: (k, j)),   # weights
            pl.BlockSpec((1, tn), lambda i, j, k: (0, j)),    # bias (k-invariant)
        ]
        out_spec = pl.BlockSpec((tm, tn), lambda i, j, k: (i, j))
        semantics = ("parallel", "parallel", "arbitrary")
        if use_scratch:
            kernel = _linear_kernel_multi_k_scratch
            scratch = [pltpu.VMEM((tm, tn), jnp.float32)]
        else:
            kernel = _linear_kernel_multi_k_f32out
            scratch = []

    out = pl.pallas_call(
        kernel,
        out_shape=jax.ShapeDtypeStruct((m_al, n_al), out_dtype),
        grid_spec=pltpu.PrefetchScalarGridSpec(
            num_scalar_prefetch=0,
            grid=grid,
            in_specs=in_specs,
            out_specs=out_spec,
            scratch_shapes=scratch,
        ),
        compiler_params=pltpu.CompilerParams(
            dimension_semantics=semantics,
            vmem_limit_bytes=vmem_limit,
        ),
        cost_estimate=pl.CostEstimate(
            flops=flops, transcendentals=0, bytes_accessed=bytes_accessed
        ),
    )(x_p, w_p, b_p)

    return out[:B, :n_out]


# ---------------------------------------------------------------------------
# Demo / self-test
# ---------------------------------------------------------------------------

if __name__ == "__main__":
    key = jax.random.PRNGKey(0)

    # --- Case 1: shapes implied by the module: Classifier(in_size=32, n_classes=8).
    # Forces the Pallas path (single-tile, no-scratch kernel) even though the
    # small-shape XLA fallback would normally take over at this size.
    B, in_size, n_classes = 4, 32, 8
    kx, kw, kb, key = jax.random.split(key, 4)
    bound = in_size ** -0.5
    w = jax.random.uniform(kw, (n_classes, in_size), jnp.float32, -bound, bound)
    b = jax.random.uniform(kb, (n_classes,), jnp.float32, -bound, bound)
    x = jax.random.normal(kx, (B, in_size), jnp.float32)

    params = prepare_classifier_params(w, b)   # pad once at setup, not per call
    y = jax.block_until_ready(
        classifier_forward(x, params["w_t"], params["b"],
                           n_classes=params["n_classes"],
                           allow_small_fallback=False))
    y_ref = x @ w.T + b
    assert y.shape == (B, n_classes)
    assert jnp.allclose(y, y_ref, atol=1e-5, rtol=1e-5)

    # --- Case 2: multi-K f32 path (accumulate directly into output block),
    # exercises pre-padded params, K reduction across grid, and the >=2 N-block
    # split for v7x (n_al=384 -> tn=128, 3 parallel N blocks).
    B2, in2, n2 = 64, 512, 384
    kx, kw, kb, key = jax.random.split(key, 4)
    bound2 = in2 ** -0.5
    w2 = jax.random.uniform(kw, (n2, in2), jnp.float32, -bound2, bound2)
    b2 = jax.random.uniform(kb, (n2,), jnp.float32, -bound2, bound2)
    x2 = jax.random.normal(kx, (B2, in2), jnp.float32)

    params2 = prepare_classifier_params(w2, b2)
    y2 = jax.block_until_ready(
        classifier_forward(x2, params2["w_t"], params2["b"],
                           n_classes=params2["n_classes"], tk=256))
    y2_ref = x2 @ w2.T + b2
    assert y2.shape == (B2, n2)
    assert jnp.allclose(y2, y2_ref, atol=1e-4, rtol=1e-4)

    # --- Case 3: bf16 compute path (halved weight HBM bytes, f32 accumulation)
    # with bf16 activations/output -> exercises the scratch-accumulator kernel.
    B3, in3, n3 = 16, 256, 128
    kx, kw, kb, key = jax.random.split(key, 4)
    bound3 = in3 ** -0.5
    w3 = jax.random.uniform(kw, (n3, in3), jnp.float32, -bound3, bound3)
    b3 = jax.random.uniform(kb, (n3,), jnp.float32, -bound3, bound3)
    x3 = jax.random.normal(kx, (B3, in3), jnp.float32).astype(jnp.bfloat16)

    params3 = prepare_classifier_params(w3, b3, compute_dtype=jnp.bfloat16)
    y3 = jax.block_until_ready(
        classifier_forward(x3, params3["w_t"], params3["b"],
                           n_classes=params3["n_classes"], tk=128,
                           compute_dtype=jnp.bfloat16))
    w3_bf = w3.T.astype(jnp.bfloat16).astype(jnp.float32)
    y3_ref = (jnp.dot(x3.astype(jnp.float32), w3_bf,
                      preferred_element_type=jnp.float32) + b3).astype(jnp.bfloat16)
    assert y3.shape == (B3, n3)
    assert jnp.allclose(y3.astype(jnp.float32), y3_ref.astype(jnp.float32),
                        atol=2e-2, rtol=2e-2)

    print("KERNEL_OK")
</pallas_src>

<mosaic_0001>
module attributes {stable_mosaic.version = 11 : i64} {
  func.func @_linear_kernel_single_k(%arg0: i32, %arg1: i32, %arg2: memref<8x128xf32, #tpu.memory_space<vmem>>, %arg3: memref<128x128xf32, #tpu.memory_space<vmem>>, %arg4: memref<1x128xf32, #tpu.memory_space<vmem>>, %arg5: memref<8x128xf32, #tpu.memory_space<vmem>>) attributes {dimension_semantics = [#tpu.dimension_semantics<parallel>, #tpu.dimension_semantics<parallel>], iteration_bounds = array<i64: 1, 1>, scalar_prefetch = 0 : i64, scratch_operands = 0 : i64, tpu.core_type = #tpu.core_type<tc>, window_params = [{transform_indices = @transform_0, window_bounds = array<i64: 8, 128>}, {transform_indices = @transform_1, window_bounds = array<i64: 128, 128>}, {transform_indices = @transform_2, window_bounds = array<i64: 1, 128>}, {transform_indices = @transform_3, window_bounds = array<i64: 8, 128>}]} {
    %c0 = arith.constant 0 : index
    %c0_0 = arith.constant 0 : index
    %0 = vector.load %arg2[%c0, %c0_0] : memref<8x128xf32, #tpu.memory_space<vmem>>, vector<8x128xf32>
    %c0_1 = arith.constant 0 : index
    %c0_2 = arith.constant 0 : index
    %1 = vector.load %arg3[%c0_1, %c0_2] : memref<128x128xf32, #tpu.memory_space<vmem>>, vector<128x128xf32>
    %cst = arith.constant dense<0.000000e+00> : vector<8x128xf32>
    %2 = tpu.matmul %0, %1, %cst {dimension_numbers = #tpu.dot_dimension_numbers<[1], [0], [0], [1], [0, 0, 1, 1], [], []>} : vector<8x128xf32>, vector<128x128xf32>, vector<8x128xf32> -> vector<8x128xf32>
    %c0_3 = arith.constant 0 : index
    %c0_4 = arith.constant 0 : index
    %3 = vector.load %arg4[%c0_3, %c0_4] : memref<1x128xf32, #tpu.memory_space<vmem>>, vector<1x128xf32>
    %4 = vector.broadcast %3 : vector<1x128xf32> to vector<8x128xf32>
    %5 = arith.addf %2, %4 : vector<8x128xf32>
    %c0_5 = arith.constant 0 : index
    %c0_6 = arith.constant 0 : index
    %6 = vector.load %arg5[%c0_5, %c0_6] : memref<8x128xf32, #tpu.memory_space<vmem>>, vector<8x128xf32>
    tpu.vector_store %arg5[%c0_5, %c0_6], %5 {strides = array<i32>} : memref<8x128xf32, #tpu.memory_space<vmem>>, vector<8x128xf32>,
    return
  }
  func.func @transform_0(%arg0: i32, %arg1: i32) -> (i32, i32) {
    %c0_i32 = arith.constant 0 : i32
    %c0_i32_0 = arith.constant 0 : i32
    return %arg0, %c0_i32 : i32, i32
  }
  func.func @transform_1(%arg0: i32, %arg1: i32) -> (i32, i32) {
    %c0_i32 = arith.constant 0 : i32
    %c0_i32_0 = arith.constant 0 : i32
    return %c0_i32, %arg1 : i32, i32
  }
  func.func @transform_2(%arg0: i32, %arg1: i32) -> (i32, i32) {
    %c0_i32 = arith.constant 0 : i32
    %c0_i32_0 = arith.constant 0 : i32
    return %c0_i32, %arg1 : i32, i32
  }
  func.func @transform_3(%arg0: i32, %arg1: i32) -> (i32, i32) {
    %c0_i32 = arith.constant 0 : i32
    return %arg0, %arg1 : i32, i32
  }
}

</mosaic_0001>

<llo_original>
// kernel: tpu_custom_call.1
$region0: #{tpu_custom_call.1}
  #allocation0 [shape = 'u32[]', space=smem, size = 0x4, offset = 0x4, fixed_abs, tag = 'smem constant byte address 0x4 - core index']
  #allocation1 [shape = 'u32[72,128]{1,0:T(1,128)}', space=vmem, size = 0x9000, scoped, tag = 'internal scratch']
  %s0 = inlined_call_operand.hbm [shape: f32[8,128], index: 0, kind: input, shape index: {}]
  %s1 = inlined_call_operand.hbm [shape: f32[128,128], index: 1, kind: input, shape index: {}]
  %s2 = inlined_call_operand.vmem [shape: f32[1,128], index: 2, kind: input, shape index: {}]
  %s3 = inlined_call_operand.hbm [shape: f32[8,128], index: 3, kind: output, shape index: {}]
  %s4 = sld [smem:[#allocation0]]
  $region30: #{tpu_custom_call.1} parent=0
    _
  %s6 = ssub.s32 1, %s4
  %s7 = scalar_select 0, %s6, %s4
  $region1: #{tpu_custom_call.1} parent=0
    #allocation2 [shape = 'u8[4096]{0}', space=vmem, size = 0x1000, scoped, tag = 'input window, operand 0, single buffered']
    #allocation3 [shape = 's32[1]{0}', space=sflag, size = 0x4, scoped, tag = 'scoped memory for tpu_custom_call.1']
    #allocation4 [shape = 's32[1]{0}', space=sflag, size = 0x4, scoped, tag = 'scoped memory for tpu_custom_call.1']
    #allocation5 [shape = 'u8[65536]{0}', space=vmem, size = 0x10000, scoped, tag = 'input window, operand 1, single buffered']
    #allocation6 [shape = 's32[1]{0}', space=sflag, size = 0x4, scoped, tag = 'scoped memory for tpu_custom_call.1']
    #allocation7 [shape = 'u8[4096]{0}', space=vmem, size = 0x1000, scoped, tag = 'output window, operand 0, single buffered']
    %8 = vsyncpa [#allocation3], 0
    %9 = vsyncpa [#allocation6], 0
    %10 = vsyncpa [#allocation4], 0
    // Predicated region
    $region2: #{tpu_custom_call.1} parent=1 // pred_check
      _
    $region3: #{tpu_custom_call.1} parent=1 // pred_check_branch
      %12 = sbr.rel (0) target = $region5
    $region4: #{tpu_custom_call.1} parent=1 // pred_region
      %14 = vsyncadd [#allocation3], 0
      %s16 = sshll.u32 %s0, 4
      %s17 = int_to_ptr.hbm [resolvable:$true] %s16
      %s18 = sshll.u32 [#allocation2], 4
      %s19 = int_to_ptr.vmem [resolvable:$true] %s18
      %21 = dma.hbm_to_vmem [thread:$0]  %s17, 128, %s19, [#allocation3]
    $region5: #{tpu_custom_call.1} parent=1 // pred_fallthru
      _
    // Predicated region
    $region6: #{tpu_custom_call.1} parent=1 // pred_check
      _
    $region7: #{tpu_custom_call.1} parent=1 // pred_check_branch
      %23 = sbr.rel (0) target = $region9
    $region8: #{tpu_custom_call.1} parent=1 // pred_region
      %25 = vsyncadd [#allocation6], 0
      %s26 = sshll.u32 %s1, 4
      %s27 = int_to_ptr.hbm [resolvable:$true] %s26
      %s28 = sshll.u32 [#allocation5], 4
      %s29 = int_to_ptr.vmem [resolvable:$true] %s28
      %34 = dma.hbm_to_vmem [thread:$0]  %s27, 2048, %s29, [#allocation6], 128, 128, 8
    $region9: #{tpu_custom_call.1} parent=1 // pred_fallthru
      _
    // Predicated region
    $region10: #{tpu_custom_call.1} parent=1 // pred_check
      _
    $region11: #{tpu_custom_call.1} parent=1 // pred_check_branch
      %36 = sbr.rel (0) target = $region13
    $region12: #{tpu_custom_call.1} parent=1 // pred_region
      _
    $region13: #{tpu_custom_call.1} parent=1 // pred_fallthru
      _
    // Predicated region
    $region14: #{tpu_custom_call.1} parent=1 // pred_check
      _
    $region15: #{tpu_custom_call.1} parent=1 // pred_check_branch
      %38 = sbr.rel (0) target = $region17
    $region16: #{tpu_custom_call.1} parent=1 // pred_region
      %40 = dma.done [#allocation3], 128
    $region17: #{tpu_custom_call.1} parent=1 // pred_fallthru
      _
    // Predicated region
    $region18: #{tpu_custom_call.1} parent=1 // pred_check
      _
    $region19: #{tpu_custom_call.1} parent=1 // pred_check_branch
      %42 = sbr.rel (0) target = $region21
    $region20: #{tpu_custom_call.1} parent=1 // pred_region
      %44 = dma.done [#allocation6], 2048
    $region21: #{tpu_custom_call.1} parent=1 // pred_fallthru
      _
    %v45 = vld [vmem:[#allocation2] sm:$0xff]
    %v46 = vld [vmem:[#allocation5] sm:$0xff]
    %v47 = vld [vmem:[#allocation5 + $0x8] sm:$0xff]
    %v48 = vld [vmem:[#allocation5 + $0x10] sm:$0xff]
    %v49 = vld [vmem:[#allocation5 + $0x18] sm:$0xff]
    %v50 = vld [vmem:[#allocation5 + $0x20] sm:$0xff]
    %v51 = vld [vmem:[#allocation5 + $0x28] sm:$0xff]
    %v52 = vld [vmem:[#allocation5 + $0x30] sm:$0xff]
    %v53 = vld [vmem:[#allocation5 + $0x38] sm:$0xff]
    %v54 = vld [vmem:[#allocation5 + $0x40] sm:$0xff]
    %v55 = vld [vmem:[#allocation5 + $0x48] sm:$0xff]
    %v56 = vld [vmem:[#allocation5 + $0x50] sm:$0xff]
    %v57 = vld [vmem:[#allocation5 + $0x58] sm:$0xff]
    %v58 = vld [vmem:[#allocation5 + $0x60] sm:$0xff]
    %v59 = vld [vmem:[#allocation5 + $0x68] sm:$0xff]
    %v60 = vld [vmem:[#allocation5 + $0x70] sm:$0xff]
    %v61 = vld [vmem:[#allocation5 + $0x78] sm:$0xff]
    %v62 = vld [vmem:[%s2] sm:$0x1]
    %v64 = vperm.slane %v62, 0
    %66 = vmatpush.msra.mxu0 %v61
    %67 = vmatpush.msra.mxu0 %v60
    %68 = vmatpush.msra.mxu0 %v59
    %69 = vmatpush.msra.mxu0 %v58
    %70 = vmatpush.msra.mxu0 %v57
    %71 = vmatpush.msra.mxu0 %v56
    %72 = vmatpush.msra.mxu0 %v55
    %73 = vmatpush.msra.mxu0 %v54
    %74 = vmatpush.msra.mxu0 %v53
    %75 = vmatpush.msra.mxu0 %v52
    %76 = vmatpush.msra.mxu0 %v51
    %77 = vmatpush.msra.mxu0 %v50
    %78 = vmatpush.msra.mxu0 %v49
    %79 = vmatpush.msra.mxu0 %v48
    %80 = vmatpush.msra.mxu0 %v47
    %81 = vmatpush.msra.mxu0 %v46
    %82 = vmatmul.f32.gmra.mxu0 %v45
    %v83 = vpop.f32.mrf.mxu0
    %v84 = vadd.f32 %v64, %v83
    %85 = vdwg.mxu0
    %86 = vst [vmem:[#allocation7] sm:$0xff] %v84
    // Predicated region
    $region22: #{tpu_custom_call.1} parent=1 // pred_check
      _
    $region23: #{tpu_custom_call.1} parent=1 // pred_check_branch
      %88 = sbr.rel (0) target = $region25
    $region24: #{tpu_custom_call.1} parent=1 // pred_region
      %90 = vsyncadd [#allocation4], 0
      %s92 = sshll.u32 [#allocation7], 4
      %s93 = int_to_ptr.vmem [resolvable:$true] %s92
      %s94 = sshll.u32 %s3, 4
      %s95 = int_to_ptr.hbm [resolvable:$true] %s94
      %97 = dma.vmem_to_hbm [thread:$0]  %s93, 128, %s95, [#allocation4]
    $region25: #{tpu_custom_call.1} parent=1 // pred_fallthru
      _
    // Predicated region
    $region26: #{tpu_custom_call.1} parent=1 // pred_check
      _
    $region27: #{tpu_custom_call.1} parent=1 // pred_check_branch
      %99 = sbr.rel (0) target = $region29
    $region28: #{tpu_custom_call.1} parent=1 // pred_region
      %101 = dma.done [#allocation4], 128
    $region29: #{tpu_custom_call.1} parent=1 // pred_fallthru
      _
    %102 = vsyncpa [#allocation3], 1
    %103 = vsyncpa [#allocation6], 1
    %104 = vsyncpa [#allocation4], 1

</llo_original>
